<compile_context>
chip_gen: v7x
topology: tpu7x:2x2x1
jax: 0.10.0
libtpu: 0.0.40
codegen_flags: <defaults>
</compile_context>

<pallas_src>
import functools

import jax
import jax.numpy as jnp
from jax.experimental import pallas as pl
from jax.experimental.pallas import tpu as pltpu

HIDDEN = 32


def _round_up(x, m):
    return (x + m - 1) // m * m


def dqn_kernel(x_ref, w1_ref, b1_ref, w2_ref, b2_ref, w3_ref, b3_ref, o_ref):
    # Fused 3-layer MLP on one batch tile, entirely in VMEM.
    # x arrives as f32 (single HBM pass); the bf16 cast is free VPU filler.
    x = x_ref[...].astype(jnp.bfloat16)
    h1 = jnp.dot(x, w1_ref[...], preferred_element_type=jnp.float32) + b1_ref[...]
    h1 = jnp.maximum(h1, 0.0)
    h2 = (jnp.dot(h1.astype(jnp.bfloat16), w2_ref[...],
                  preferred_element_type=jnp.float32) + b2_ref[...])
    h2 = jnp.maximum(h2, 0.0)
    out = (jnp.dot(h2.astype(jnp.bfloat16), w3_ref[...],
                   preferred_element_type=jnp.float32) + b3_ref[...])
    o_ref[...] = out.astype(o_ref.dtype)


def _pad_lane(n):
    return _round_up(max(n, 1), 128)


def _pad_sublane(n, itemsize):
    return _round_up(max(n, 1), 8 * (4 // itemsize))


def _tile_vmem_bytes(tb, in_dim, out_dim, out_itemsize):
    """Layout-aware per-tile VMEM estimate (physical padded dims)."""
    x_bytes = 2 * _pad_sublane(tb, 4) * _pad_lane(in_dim) * 4             # f32 in, 2 bufs
    o_bytes = 2 * _pad_sublane(tb, out_itemsize) * _pad_lane(out_dim) * out_itemsize
    act = 3 * _pad_sublane(tb, 4) * _pad_lane(HIDDEN) * 4                 # h1, h2, acc f32
    resident = 256 * 1024                                                 # weights/bias slack
    return x_bytes + o_bytes + act + resident


def _vmem_budget_and_limit():
    # 128 MiB parts (v5e/v6e) can take a 64 MiB budget; v7x (64 MiB) stays at 32 MiB.
    try:
        cap = pltpu.get_tpu_info().vmem_capacity_bytes
    except Exception:  # interpret mode / unknown part
        cap = 64 * 1024 * 1024
    if cap >= 128 * 1024 * 1024:
        return 64 * 1024 * 1024, 64 * 1024 * 1024
    return 32 * 1024 * 1024, 32 * 1024 * 1024


@functools.partial(jax.jit, static_argnames=("block_rows", "out_dtype"))
def dqn_forward(x, params, *, block_rows=4096, out_dtype=jnp.bfloat16):
    """x: (B, input_dim) f32. params: dict from init_params (pre-transposed)."""
    w1, b1 = params["w1t"], params["b1"]   # (in, 32) bf16, (1, 32) f32
    w2, b2 = params["w2t"], params["b2"]   # (32, 32) bf16, (1, 32) f32
    w3, b3 = params["w3t"], params["b3"]   # (32, out) bf16, (1, out) f32

    B, in_dim = x.shape
    out_dim = w3.shape[1]
    out_itemsize = jnp.dtype(out_dtype).itemsize

    budget, vmem_limit = _vmem_budget_and_limit()

    # Batch tile: big (amortizes per-step pipeline overhead), multiple of 8
    # (f32 sublanes), capped by the layout-aware VMEM budget.
    tb = _round_up(min(block_rows, _round_up(B, 8)), 8)
    # Keep >= 2 grid steps whenever possible so v7x's second TensorCore gets work.
    if B > 8:
        tb = min(tb, _round_up(pl.cdiv(B, 2), 8))
    while tb > 8 and _tile_vmem_bytes(tb, in_dim, out_dim, out_itemsize) > budget:
        tb = max(8, _round_up(tb // 2, 8))

    grid = (pl.cdiv(B, tb),)   # partial last block masked by Pallas: no pad, no slice

    def resident(arr):
        # Full-shape block, constant index -> stays resident in VMEM.
        return pl.BlockSpec(arr.shape, lambda i: (0, 0))

    flops = 2 * B * (in_dim * HIDDEN + HIDDEN * HIDDEN + HIDDEN * out_dim)
    weight_bytes = sum(int(a.size) * a.dtype.itemsize
                       for a in (w1, b1, w2, b2, w3, b3))
    bytes_accessed = B * (4 * in_dim + out_itemsize * out_dim) + weight_bytes

    return pl.pallas_call(
        dqn_kernel,
        out_shape=jax.ShapeDtypeStruct((B, out_dim), out_dtype),
        grid=grid,
        in_specs=[
            pl.BlockSpec((tb, in_dim), lambda i: (i, 0)),   # x: streamed f32 tiles
            resident(w1), resident(b1),
            resident(w2), resident(b2),
            resident(w3), resident(b3),
        ],
        out_specs=pl.BlockSpec((tb, out_dim), lambda i: (i, 0)),
        compiler_params=pltpu.CompilerParams(
            dimension_semantics=("parallel",),              # megacore on v7x
            vmem_limit_bytes=vmem_limit,
        ),
        cost_estimate=pl.CostEstimate(
            flops=flops, transcendentals=0, bytes_accessed=bytes_accessed),
    )(x, w1, b1, w2, b2, w3, b3)


def init_params(key, input_dim, output_dim, hidden=HIDDEN):
    """nn.Linear-style init; stores weights pre-transposed (in, out) in bf16
    and biases as (1, out) f32 so the forward pass does zero layout work."""
    ks = jax.random.split(key, 6)

    def lin(kw, kb, fan_in, fan_out):
        bound = 1.0 / jnp.sqrt(fan_in)
        w = jax.random.uniform(kw, (fan_out, fan_in), jnp.float32, -bound, bound)
        b = jax.random.uniform(kb, (fan_out,), jnp.float32, -bound, bound)
        return w.T.astype(jnp.bfloat16), b[None, :]   # (in, out) bf16, (1, out) f32

    w1t, b1 = lin(ks[0], ks[1], input_dim, hidden)
    w2t, b2 = lin(ks[2], ks[3], hidden, hidden)
    w3t, b3 = lin(ks[4], ks[5], hidden, output_dim)
    return {"w1t": w1t, "b1": b1, "w2t": w2t, "b2": b2, "w3t": w3t, "b3": b3}


def dqn_reference(x, p):
    """Pure-JAX reference using the same bf16 operand quantization as the
    kernel (f32 accumulate), so the comparison isolates kernel mechanics."""
    def q(a):
        return a.astype(jnp.bfloat16).astype(jnp.float32)

    h1 = jnp.maximum(q(x) @ q(p["w1t"]) + p["b1"], 0.0)
    h2 = jnp.maximum(q(h1) @ q(p["w2t"]) + p["b2"], 0.0)
    return q(h2) @ q(p["w3t"]) + p["b3"]


if __name__ == "__main__":
    key = jax.random.PRNGKey(0)
    k_x, k_p = jax.random.split(key)

    batch, input_dim, output_dim = 40, 16, 8
    x = jax.random.normal(k_x, (batch, input_dim), dtype=jnp.float32)
    params = init_params(k_p, input_dim, output_dim)

    # Small block_rows exercises a 3-step grid with a masked partial last block.
    out = jax.block_until_ready(dqn_forward(x, params, block_rows=16))
    ref = jax.block_until_ready(dqn_reference(x, params))

    assert out.shape == (batch, output_dim)
    err = float(jnp.max(jnp.abs(out.astype(jnp.float32) - ref)))
    assert err < 3e-2, err   # bf16-output rounding tolerance

    # Default large-tile path (still split into >=2 parallel grid steps).
    out2 = jax.block_until_ready(dqn_forward(x, params))
    err2 = float(jnp.max(jnp.abs(out2.astype(jnp.float32) - ref)))
    assert err2 < 3e-2, err2

    print("KERNEL_OK")
</pallas_src>

<mosaic_0001>
module attributes {stable_mosaic.version = 11 : i64} {
  func.func @dqn_kernel(%arg0: i32, %arg1: memref<16x16xf32, #tpu.memory_space<vmem>>, %arg2: memref<16x32xbf16, #tpu.memory_space<vmem>>, %arg3: memref<1x32xf32, #tpu.memory_space<vmem>>, %arg4: memref<32x32xbf16, #tpu.memory_space<vmem>>, %arg5: memref<1x32xf32, #tpu.memory_space<vmem>>, %arg6: memref<32x8xbf16, #tpu.memory_space<vmem>>, %arg7: memref<1x8xf32, #tpu.memory_space<vmem>>, %arg8: memref<16x8xbf16, #tpu.memory_space<vmem>>) attributes {dimension_semantics = [#tpu.dimension_semantics<parallel>], iteration_bounds = array<i64: 3>, scalar_prefetch = 0 : i64, scratch_operands = 0 : i64, tpu.core_type = #tpu.core_type<tc>, window_params = [{transform_indices = @transform_0, window_bounds = array<i64: 16, 16>}, {pipeline_mode = #tpu.pipeline_mode<synchronous>, transform_indices = @transform_1, window_bounds = array<i64: 16, 32>}, {pipeline_mode = #tpu.pipeline_mode<synchronous>, transform_indices = @transform_2, window_bounds = array<i64: 1, 32>}, {pipeline_mode = #tpu.pipeline_mode<synchronous>, transform_indices = @transform_3, window_bounds = array<i64: 32, 32>}, {pipeline_mode = #tpu.pipeline_mode<synchronous>, transform_indices = @transform_4, window_bounds = array<i64: 1, 32>}, {pipeline_mode = #tpu.pipeline_mode<synchronous>, transform_indices = @transform_5, window_bounds = array<i64: 32, 8>}, {pipeline_mode = #tpu.pipeline_mode<synchronous>, transform_indices = @transform_6, window_bounds = array<i64: 1, 8>}, {transform_indices = @transform_7, window_bounds = array<i64: 16, 8>}]} {
    %c0 = arith.constant 0 : index
    %c0_0 = arith.constant 0 : index
    %0 = vector.load %arg1[%c0, %c0_0] : memref<16x16xf32, #tpu.memory_space<vmem>>, vector<16x16xf32>
    %1 = arith.truncf %0 : vector<16x16xf32> to vector<16x16xbf16>
    %c0_1 = arith.constant 0 : index
    %c0_2 = arith.constant 0 : index
    %2 = vector.load %arg2[%c0_1, %c0_2] : memref<16x32xbf16, #tpu.memory_space<vmem>>, vector<16x32xbf16>
    %cst = arith.constant dense<0.000000e+00> : vector<16x32xf32>
    %3 = tpu.matmul %1, %2, %cst {dimension_numbers = #tpu.dot_dimension_numbers<[1], [0], [0], [1], [0, 0, 1, 1], [], []>} : vector<16x16xbf16>, vector<16x32xbf16>, vector<16x32xf32> -> vector<16x32xf32>
    %c0_3 = arith.constant 0 : index
    %c0_4 = arith.constant 0 : index
    %4 = vector.load %arg3[%c0_3, %c0_4] : memref<1x32xf32, #tpu.memory_space<vmem>>, vector<1x32xf32>
    %5 = vector.broadcast %4 : vector<1x32xf32> to vector<16x32xf32>
    %6 = arith.addf %3, %5 : vector<16x32xf32>
    %cst_5 = arith.constant 0.000000e+00 : f32
    %7 = vector.broadcast %cst_5 : f32 to vector<16x32xf32>
    %8 = arith.maximumf %6, %7 : vector<16x32xf32>
    %9 = arith.truncf %8 : vector<16x32xf32> to vector<16x32xbf16>
    %c0_6 = arith.constant 0 : index
    %c0_7 = arith.constant 0 : index
    %10 = vector.load %arg4[%c0_6, %c0_7] : memref<32x32xbf16, #tpu.memory_space<vmem>>, vector<32x32xbf16>
    %cst_8 = arith.constant dense<0.000000e+00> : vector<16x32xf32>
    %11 = tpu.matmul %9, %10, %cst_8 {dimension_numbers = #tpu.dot_dimension_numbers<[1], [0], [0], [1], [0, 0, 1, 1], [], []>} : vector<16x32xbf16>, vector<32x32xbf16>, vector<16x32xf32> -> vector<16x32xf32>
    %c0_9 = arith.constant 0 : index
    %c0_10 = arith.constant 0 : index
    %12 = vector.load %arg5[%c0_9, %c0_10] : memref<1x32xf32, #tpu.memory_space<vmem>>, vector<1x32xf32>
    %13 = vector.broadcast %12 : vector<1x32xf32> to vector<16x32xf32>
    %14 = arith.addf %11, %13 : vector<16x32xf32>
    %cst_11 = arith.constant 0.000000e+00 : f32
    %15 = vector.broadcast %cst_11 : f32 to vector<16x32xf32>
    %16 = arith.maximumf %14, %15 : vector<16x32xf32>
    %17 = arith.truncf %16 : vector<16x32xf32> to vector<16x32xbf16>
    %c0_12 = arith.constant 0 : index
    %c0_13 = arith.constant 0 : index
    %18 = vector.load %arg6[%c0_12, %c0_13] : memref<32x8xbf16, #tpu.memory_space<vmem>>, vector<32x8xbf16>
    %cst_14 = arith.constant dense<0.000000e+00> : vector<16x8xf32>
    %19 = tpu.matmul %17, %18, %cst_14 {dimension_numbers = #tpu.dot_dimension_numbers<[1], [0], [0], [1], [0, 0, 1, 1], [], []>} : vector<16x32xbf16>, vector<32x8xbf16>, vector<16x8xf32> -> vector<16x8xf32>
    %c0_15 = arith.constant 0 : index
    %c0_16 = arith.constant 0 : index
    %20 = vector.load %arg7[%c0_15, %c0_16] : memref<1x8xf32, #tpu.memory_space<vmem>>, vector<1x8xf32>
    %21 = vector.broadcast %20 : vector<1x8xf32> to vector<16x8xf32>
    %22 = arith.addf %19, %21 : vector<16x8xf32>
    %23 = arith.truncf %22 : vector<16x8xf32> to vector<16x8xbf16>
    %c0_17 = arith.constant 0 : index
    %c0_18 = arith.constant 0 : index
    %24 = vector.load %arg8[%c0_17, %c0_18] : memref<16x8xbf16, #tpu.memory_space<vmem>>, vector<16x8xbf16>
    tpu.vector_store %arg8[%c0_17, %c0_18], %23 {strides = array<i32>} : memref<16x8xbf16, #tpu.memory_space<vmem>>, vector<16x8xbf16>,
    return
  }
  func.func @transform_0(%arg0: i32) -> (i32, i32) {
    %c0_i32 = arith.constant 0 : i32
    %c0_i32_0 = arith.constant 0 : i32
    return %arg0, %c0_i32 : i32, i32
  }
  func.func @transform_1(%arg0: i32) -> (i32, i32) {
    %c0_i32 = arith.constant 0 : i32
    %c0_i32_0 = arith.constant 0 : i32
    %c0_i32_1 = arith.constant 0 : i32
    return %c0_i32, %c0_i32_0 : i32, i32
  }
  func.func @transform_2(%arg0: i32) -> (i32, i32) {
    %c0_i32 = arith.constant 0 : i32
    %c0_i32_0 = arith.constant 0 : i32
    %c0_i32_1 = arith.constant 0 : i32
    return %c0_i32, %c0_i32_0 : i32, i32
  }
  func.func @transform_3(%arg0: i32) -> (i32, i32) {
    %c0_i32 = arith.constant 0 : i32
    %c0_i32_0 = arith.constant 0 : i32
    %c0_i32_1 = arith.constant 0 : i32
    return %c0_i32, %c0_i32_0 : i32, i32
  }
  func.func @transform_4(%arg0: i32) -> (i32, i32) {
    %c0_i32 = arith.constant 0 : i32
    %c0_i32_0 = arith.constant 0 : i32
    %c0_i32_1 = arith.constant 0 : i32
    return %c0_i32, %c0_i32_0 : i32, i32
  }
  func.func @transform_5(%arg0: i32) -> (i32, i32) {
    %c0_i32 = arith.constant 0 : i32
    %c0_i32_0 = arith.constant 0 : i32
    %c0_i32_1 = arith.constant 0 : i32
    return %c0_i32, %c0_i32_0 : i32, i32
  }
  func.func @transform_6(%arg0: i32) -> (i32, i32) {
    %c0_i32 = arith.constant 0 : i32
    %c0_i32_0 = arith.constant 0 : i32
    %c0_i32_1 = arith.constant 0 : i32
    return %c0_i32, %c0_i32_0 : i32, i32
  }
  func.func @transform_7(%arg0: i32) -> (i32, i32) {
    %c0_i32 = arith.constant 0 : i32
    %c0_i32_0 = arith.constant 0 : i32
    return %arg0, %c0_i32 : i32, i32
  }
}

</mosaic_0001>

<llo_original>
// kernel: dqn_forward.1
$region0: #{dqn_forward.1}
  #allocation0 [shape = 'u32[]', space=smem, size = 0x4, offset = 0x4, fixed_abs, tag = 'smem constant byte address 0x4 - core index']
  #allocation1 [shape = 'u32[144,128]{1,0:T(1,128)}', space=vmem, size = 0x12000, scoped, tag = 'internal scratch']
  %s0 = inlined_call_operand.vmem [shape: f32[40,16], index: 0, kind: input, shape index: {}]
  %s1 = inlined_call_operand.vmem [shape: bf16[16,32], index: 1, kind: input, shape index: {}]
  %s2 = inlined_call_operand.vmem [shape: f32[1,32], index: 2, kind: input, shape index: {}]
  %s3 = inlined_call_operand.vmem [shape: bf16[32,32], index: 3, kind: input, shape index: {}]
  %s4 = inlined_call_operand.vmem [shape: f32[1,32], index: 4, kind: input, shape index: {}]
  %s5 = inlined_call_operand.vmem [shape: bf16[32,8], index: 5, kind: input, shape index: {}]
  %s6 = inlined_call_operand.vmem [shape: f32[1,8], index: 6, kind: input, shape index: {}]
  %s7 = inlined_call_operand.vmem [shape: bf16[40,8], index: 7, kind: output, shape index: {}]
  %s8 = sld [smem:[#allocation0]]
  $region105: #{dqn_forward.1} parent=0
    _
  %s10 = ssub.s32 1, %s8
  %s11 = scalar_select 0, %s10, %s8
  $region1: #{dqn_forward.1} parent=0
    #allocation2 [shape = 'u8[8192]{0}', space=vmem, size = 0x2000, scoped, tag = 'output window, operand 0']
    loop: start=0, step=1, limit=5
    $region2: #{dqn_forward.1} parent=1 // loop_pre_header
      _
    $region3: #{dqn_forward.1} parent=1 // loop_header
      %s13 = sphi 0, %s17
      %p14 = scmp.ge.s32.totalorder %s13, 5
      %s23 = sphi 0, %s25
      %s26 = sphi 0, %s23
      %s27 = sphi 0, %s26
      %s43 = sphi 0, %s27
      %s47 = sphi 0, %s47
      %s49 = sphi 0, %s47
      %s50 = sphi 0, %s49
      %s64 = sphi 0, %s50
      %s68 = sphi 0, %s68
      %s70 = sphi 0, %s68
      %s71 = sphi 0, %s70
      %s85 = sphi 0, %s71
      %s89 = sphi 0, %s89
      %s91 = sphi 0, %s89
      %s92 = sphi 0, %s91
      %s106 = sphi 0, %s92
      %s110 = sphi 0, %s110
      %s112 = sphi 0, %s110
      %s113 = sphi 0, %s112
      %s127 = sphi 0, %s113
      %s131 = sphi 0, %s131
      %s133 = sphi 0, %s131
      %s134 = sphi 0, %s133
      %s148 = sphi 0, %s134
      %s152 = sphi 0, %s152
      %s154 = sphi 0, %s152
      %s155 = sphi 0, %s154
      %s169 = sphi 0, %s155
      %s175 = sphi 0, %s177
      %s178 = sphi 0, %s175
      %s179 = sphi 0, %s178
      %s195 = sphi 0, %s179
    $region4: #{dqn_forward.1} parent=1 // loop_header_branch
      %16 = sbr.rel (%p14) target = $region8
    $region5: #{dqn_forward.1} parent=1 // loop_body
      %s18 = ssub.s32 %s13, 1
      %s19 = ssub.s32 %s13, 2
      %s20 = sadd.s32 %s13, 1
      %s21 = ssub.s32 %s13, %s20
      %p22 = scmp.eq.s32.totalorder %s21, 0
      %s24 = sadd.s32 %s23, 1
      %s25 = scalar_select %p22, %s23, %s24
      %p28 = pneg %p22
      %p29 = scmp.eq.s32.totalorder %s13, 2
      %p30 = por %p28, %p29
      %p31 = scmp.ne.s32.totalorder %s23, %s26
      %p32 = scmp.eq.s32.totalorder %s13, 0
      %p33 = por %p31, %p32
      %p34 = scmp.ne.s32.totalorder %s23, %s26
      %p35 = scmp.eq.s32.totalorder %s18, 2
      %p36 = por %p34, %p35
      %p37 = scmp.ne.s32.totalorder %s26, %s27
      %p38 = scmp.eq.s32.totalorder %s18, 0
      %p39 = por %p37, %p38
      %p40 = scmp.ne.s32.totalorder %s26, %s27
      %p41 = scmp.eq.s32.totalorder %s19, 2
      %p42 = por %p40, %p41
      %p44 = scmp.ne.s32.totalorder %s27, %s43
      %p45 = scmp.eq.s32.totalorder %s19, 0
      %p46 = por %p44, %p45
      %s48 = sadd.s32 %s47, 1
      %p51 = scmp.eq.s32.totalorder %s13, 2
      %p52 = scmp.ne.s32.totalorder %s47, %s49
      %p53 = scmp.eq.s32.totalorder %s13, 0
      %p54 = por %p52, %p53
      %p55 = scmp.ne.s32.totalorder %s47, %s49
      %p56 = scmp.eq.s32.totalorder %s18, 2
      %p57 = por %p55, %p56
      %p58 = scmp.ne.s32.totalorder %s49, %s50
      %p59 = scmp.eq.s32.totalorder %s18, 0
      %p60 = por %p58, %p59
      %p61 = scmp.ne.s32.totalorder %s49, %s50
      %p62 = scmp.eq.s32.totalorder %s19, 2
      %p63 = por %p61, %p62
      %p65 = scmp.ne.s32.totalorder %s50, %s64
      %p66 = scmp.eq.s32.totalorder %s19, 0
      %p67 = por %p65, %p66
      %s69 = sadd.s32 %s68, 1
      %p72 = scmp.eq.s32.totalorder %s13, 2
      %p73 = scmp.ne.s32.totalorder %s68, %s70
      %p74 = scmp.eq.s32.totalorder %s13, 0
      %p75 = por %p73, %p74
      %p76 = scmp.ne.s32.totalorder %s68, %s70
      %p77 = scmp.eq.s32.totalorder %s18, 2
      %p78 = por %p76, %p77
      %p79 = scmp.ne.s32.totalorder %s70, %s71
      %p80 = scmp.eq.s32.totalorder %s18, 0
      %p81 = por %p79, %p80
      %p82 = scmp.ne.s32.totalorder %s70, %s71
      %p83 = scmp.eq.s32.totalorder %s19, 2
      %p84 = por %p82, %p83
      %p86 = scmp.ne.s32.totalorder %s71, %s85
      %p87 = scmp.eq.s32.totalorder %s19, 0
      %p88 = por %p86, %p87
      %s90 = sadd.s32 %s89, 1
      %p93 = scmp.eq.s32.totalorder %s13, 2
      %p94 = scmp.ne.s32.totalorder %s89, %s91
      %p95 = scmp.eq.s32.totalorder %s13, 0
      %p96 = por %p94, %p95
      %p97 = scmp.ne.s32.totalorder %s89, %s91
      %p98 = scmp.eq.s32.totalorder %s18, 2
      %p99 = por %p97, %p98
      %p100 = scmp.ne.s32.totalorder %s91, %s92
      %p101 = scmp.eq.s32.totalorder %s18, 0
      %p102 = por %p100, %p101
      %p103 = scmp.ne.s32.totalorder %s91, %s92
      %p104 = scmp.eq.s32.totalorder %s19, 2
      %p105 = por %p103, %p104
      %p107 = scmp.ne.s32.totalorder %s92, %s106
      %p108 = scmp.eq.s32.totalorder %s19, 0
      %p109 = por %p107, %p108
      %s111 = sadd.s32 %s110, 1
      %p114 = scmp.eq.s32.totalorder %s13, 2
      %p115 = scmp.ne.s32.totalorder %s110, %s112
      %p116 = scmp.eq.s32.totalorder %s13, 0
      %p117 = por %p115, %p116
      %p118 = scmp.ne.s32.totalorder %s110, %s112
      %p119 = scmp.eq.s32.totalorder %s18, 2
      %p120 = por %p118, %p119
      %p121 = scmp.ne.s32.totalorder %s112, %s113
      %p122 = scmp.eq.s32.totalorder %s18, 0
      %p123 = por %p121, %p122
      %p124 = scmp.ne.s32.totalorder %s112, %s113
      %p125 = scmp.eq.s32.totalorder %s19, 2
      %p126 = por %p124, %p125
      %p128 = scmp.ne.s32.totalorder %s113, %s127
      %p129 = scmp.eq.s32.totalorder %s19, 0
      %p130 = por %p128, %p129
      %s132 = sadd.s32 %s131, 1
      %p135 = scmp.eq.s32.totalorder %s13, 2
      %p136 = scmp.ne.s32.totalorder %s131, %s133
      %p137 = scmp.eq.s32.totalorder %s13, 0
      %p138 = por %p136, %p137
      %p139 = scmp.ne.s32.totalorder %s131, %s133
      %p140 = scmp.eq.s32.totalorder %s18, 2
      %p141 = por %p139, %p140
      %p142 = scmp.ne.s32.totalorder %s133, %s134
      %p143 = scmp.eq.s32.totalorder %s18, 0
      %p144 = por %p142, %p143
      %p145 = scmp.ne.s32.totalorder %s133, %s134
      %p146 = scmp.eq.s32.totalorder %s19, 2
      %p147 = por %p145, %p146
      %p149 = scmp.ne.s32.totalorder %s134, %s148
      %p150 = scmp.eq.s32.totalorder %s19, 0
      %p151 = por %p149, %p150
      %s153 = sadd.s32 %s152, 1
      %p156 = scmp.eq.s32.totalorder %s13, 2
      %p157 = scmp.ne.s32.totalorder %s152, %s154
      %p158 = scmp.eq.s32.totalorder %s13, 0
      %p159 = por %p157, %p158
      %p160 = scmp.ne.s32.totalorder %s152, %s154
      %p161 = scmp.eq.s32.totalorder %s18, 2
      %p162 = por %p160, %p161
      %p163 = scmp.ne.s32.totalorder %s154, %s155
      %p164 = scmp.eq.s32.totalorder %s18, 0
      %p165 = por %p163, %p164
      %p166 = scmp.ne.s32.totalorder %s154, %s155
      %p167 = scmp.eq.s32.totalorder %s19, 2
      %p168 = por %p166, %p167
      %p170 = scmp.ne.s32.totalorder %s155, %s169
      %p171 = scmp.eq.s32.totalorder %s19, 0
      %p172 = por %p170, %p171
      %s173 = ssub.s32 %s13, %s20
      %p174 = scmp.eq.s32.totalorder %s173, 0
      %s176 = sadd.s32 %s175, 1
      %s177 = scalar_select %p174, %s175, %s176
      %p180 = pneg %p174
      %p181 = scmp.eq.s32.totalorder %s13, 2
      %p182 = por %p180, %p181
      %p183 = scmp.ne.s32.totalorder %s175, %s178
      %p184 = scmp.eq.s32.totalorder %s13, 0
      %p185 = por %p183, %p184
      %p186 = scmp.ne.s32.totalorder %s175, %s178
      %p187 = scmp.eq.s32.totalorder %s18, 2
      %p188 = por %p186, %p187
      %p189 = scmp.ne.s32.totalorder %s178, %s179
      %p190 = scmp.eq.s32.totalorder %s18, 0
      %p191 = por %p189, %p190
      %p192 = scmp.ne.s32.totalorder %s178, %s179
      %p193 = scmp.eq.s32.totalorder %s19, 2
      %p194 = por %p192, %p193
      %p196 = scmp.ne.s32.totalorder %s179, %s195
      %p197 = scmp.eq.s32.totalorder %s19, 0
      %p198 = por %p196, %p197
      %p199 = scmp.le.s32.totalorder 1, %s13
      %p200 = scmp.lt.s32.totalorder %s13, 4
      %p201 = pnand %p199, %p200
      %p202 = pneg %p201
      // Predicated region
      $region9: #{dqn_forward.1} parent=5 // pred_check
        _
      $region10: #{dqn_forward.1} parent=5 // pred_check_branch
        %204 = sbr.rel (%p201) target = $region12
      $region11: #{dqn_forward.1} parent=5 // pred_region
        %s205 = ssub.s32 %s13, 1
        // Predicated region
        $region13: #{dqn_forward.1} parent=11 // pred_check
          %p206 = pneg %p60
        $region14: #{dqn_forward.1} parent=11 // pred_check_branch
          %208 = sbr.rel (%p206) target = $region16
        $region15: #{dqn_forward.1} parent=11 // pred_region
          _
        $region16: #{dqn_forward.1} parent=11 // pred_fallthru
          _
        // Predicated region
        $region17: #{dqn_forward.1} parent=11 // pred_check
          %p209 = pneg %p81
        $region18: #{dqn_forward.1} parent=11 // pred_check_branch
          %211 = sbr.rel (%p209) target = $region20
        $region19: #{dqn_forward.1} parent=11 // pred_region
          _
        $region20: #{dqn_forward.1} parent=11 // pred_fallthru
          _
        // Predicated region
        $region21: #{dqn_forward.1} parent=11 // pred_check
          %p212 = pneg %p102
        $region22: #{dqn_forward.1} parent=11 // pred_check_branch
          %214 = sbr.rel (%p212) target = $region24
        $region23: #{dqn_forward.1} parent=11 // pred_region
          _
        $region24: #{dqn_forward.1} parent=11 // pred_fallthru
          _
        // Predicated region
        $region25: #{dqn_forward.1} parent=11 // pred_check
          %p215 = pneg %p123
        $region26: #{dqn_forward.1} parent=11 // pred_check_branch
          %217 = sbr.rel (%p215) target = $region28
        $region27: #{dqn_forward.1} parent=11 // pred_region
          _
        $region28: #{dqn_forward.1} parent=11 // pred_fallthru
          _
        // Predicated region
        $region29: #{dqn_forward.1} parent=11 // pred_check
          %p218 = pneg %p144
        $region30: #{dqn_forward.1} parent=11 // pred_check_branch
          %220 = sbr.rel (%p218) target = $region32
        $region31: #{dqn_forward.1} parent=11 // pred_region
          _
        $region32: #{dqn_forward.1} parent=11 // pred_fallthru
          _
        // Predicated region
        $region33: #{dqn_forward.1} parent=11 // pred_check
          %p221 = pneg %p165
        $region34: #{dqn_forward.1} parent=11 // pred_check_branch
          %223 = sbr.rel (%p221) target = $region36
        $region35: #{dqn_forward.1} parent=11 // pred_region
          _
        $region36: #{dqn_forward.1} parent=11 // pred_fallthru
          _
      $region12: #{dqn_forward.1} parent=5 // pred_fallthru
        _
      %p224 = scmp.lt.s32.totalorder %s13, 3
      // Predicated region
      $region37: #{dqn_forward.1} parent=5 // pred_check
        %p225 = pneg %p224
      $region38: #{dqn_forward.1} parent=5 // pred_check_branch
        %227 = sbr.rel (%p225) target = $region40
      $region39: #{dqn_forward.1} parent=5 // pred_region
        // Predicated region
        $region41: #{dqn_forward.1} parent=39 // pred_check
          %p228 = pneg %p33
        $region42: #{dqn_forward.1} parent=39 // pred_check_branch
          %230 = sbr.rel (%p228) target = $region44
        $region43: #{dqn_forward.1} parent=39 // pred_region
          %s231 = smul.u32 2, %s13
          %s232 = ssub.s32 5, %s231
          %p233 = scmp.lt.s32.totalorder %s232, 2
          %s234 = scalar_select %p233, %s232, 2
          %s235 = smul.u32 128, %s234
          %p236 = scmp.lt.s32.totalorder %s231, 4
          %s237 = scalar_select %p236, %s231, 4
          %s238 = smul.addr %s237, 8
          %s239 = scalar_lea.vmem %s0, %s238
          %s240 = smul.u32 2, %s13
          %s241 = ssub.s32 5, %s240
          %p242 = scmp.lt.s32.totalorder %s241, 2
          %s243 = scalar_select %p242, %s241, 2
          %s244 = smul.u32 128, %s243
        $region44: #{dqn_forward.1} parent=39 // pred_fallthru
          _
      $region40: #{dqn_forward.1} parent=5 // pred_fallthru
        _
      %p245 = scmp.le.s32.totalorder 1, %s13
      %p246 = scmp.lt.s32.totalorder %s13, 4
      %p247 = pnand %p245, %p246
      %p248 = pneg %p247
      // Predicated region
      $region45: #{dqn_forward.1} parent=5 // pred_check
        _
      $region46: #{dqn_forward.1} parent=5 // pred_check_branch
        %250 = sbr.rel (%p247) target = $region48
      $region47: #{dqn_forward.1} parent=5 // pred_region
        %s251 = ssub.s32 %s13, 1
        %s252 = smul.u32 2, %s18
        %s253 = ssub.s32 5, %s252
        %p254 = scmp.lt.s32.totalorder %s253, 2
        %s255 = scalar_select %p254, %s253, 2
        %s256 = smul.u32 128, %s255
        %p257 = scmp.lt.s32.totalorder %s252, 4
        %s258 = scalar_select %p257, %s252, 4
        %s259 = smul.addr %s258, 8
        %s260 = scalar_lea.vmem %s0, %s259
        %p261 = pneg %p39
        %p262 = pneg %p36
        %p263 = pneg %p60
        %p264 = pneg %p57
        %p265 = pneg %p81
        %p266 = pneg %p78
        %p267 = pneg %p102
        %p268 = pneg %p99
        %p269 = pneg %p123
        %p270 = pneg %p120
        %p271 = pneg %p144
        %p272 = pneg %p141
        %p273 = pneg %p165
        %p274 = pneg %p162
        %p275 = pneg %p191
        %p276 = pneg %p188
        %s277 = sand.u32 %s178, 1
        %s278 = sand.u32 %s178, 1
        %s279 = smul.addr %s278, 8
        %s280 = scalar_lea.vmem [#allocation2], %s279
        %s281 = smul.u32 2, %s18
        %s282 = ssub.s32 5, %s281
        %p283 = scmp.lt.s32.totalorder %s282, 2
        %s284 = scalar_select %p283, %s282, 2
        %s285 = smul.u32 128, %s284
        %p286 = scmp.lt.s32.totalorder %s281, 4
        %s287 = scalar_select %p286, %s281, 4
        %s288 = smul.addr %s287, 8
        %s289 = scalar_lea.vmem %s0, %s288
        %s290 = smul.u32 2, %s18
        %s291 = ssub.s32 5, %s290
        %p292 = scmp.lt.s32.totalorder %s291, 2
        %s293 = scalar_select %p292, %s291, 2
        %s294 = smul.u32 128, %s293
        %s295 = smul.u32 2, %s18
        %s296 = ssub.s32 5, %s295
        %p297 = scmp.lt.s32.totalorder %s296, 2
        %s298 = scalar_select %p297, %s296, 2
        %s299 = smul.u32 64, %s298
        %v301 = vld [vmem:[%s289] sm:$0xff]
        %v302 = vld [vmem:[%s289 + $0x8] sm:$0xff]
        %v303 = vpack.c.bf16 %v302, %v301
        %v304 = vld [vmem:[%s1] sm:$0xf]
        %v305 = vld [vmem:[%s1 + $0x4] sm:$0xf]
        %v306 = vld [vmem:[%s2] sm:$0x1]
        %v308 = vlaneseq
        %v309 = vshrl.u32 %v308, 7
        %v310 = vsub.s32 0, %v309
        %v311 = vrot.slane %v306, %v310
        %v315 = vunpack.c.l.b16 %v304
        %v316 = vunpack.c.l.b16 %v305
        %v317 = vpack.c.b16 %v316, %v315
        %vm319 = vcmask 130048
        %v321 = vsel %vm319, %v303, 0
        %323 = vmatprep.subr.bf16.mxu0 0
        %324 = vmatpush1.bf16.msra.mxu0 %v317
        %325 = vmatprep.subr.bf16.mxu0 0
        %326 = vmatpush1.bf16.msra.mxu0 0
        %327 = vmatprep.subr.bf16.mxu0 0
        %328 = vmatpush1.bf16.msra.mxu0 0
        %329 = vmatprep.subr.bf16.mxu0 0
        %330 = vmatpush1.bf16.msra.mxu0 0
        %331 = vmatprep.subr.bf16.mxu0 0
        %332 = vmatpush1.bf16.msra.mxu0 0
        %333 = vmatprep.subr.bf16.mxu0 0
        %334 = vmatpush1.bf16.msra.mxu0 0
        %335 = vmatprep.subr.bf16.mxu0 0
        %336 = vmatpush1.bf16.msra.mxu0 0
        %337 = vmatprep.subr.bf16.mxu0 0
        %338 = vmatpush1.bf16.msra.mxu0 0
        %339 = vmatprep.subr.bf16.mxu0 0
        %340 = vmatpush1.bf16.msra.mxu0 0
        %341 = vmatprep.subr.bf16.mxu0 0
        %342 = vmatpush1.bf16.msra.mxu0 0
        %343 = vmatprep.subr.bf16.mxu0 0
        %344 = vmatpush1.bf16.msra.mxu0 0
        %345 = vmatprep.subr.bf16.mxu0 0
        %346 = vmatpush1.bf16.msra.mxu0 0
        %347 = vmatprep.subr.bf16.mxu0 0
        %348 = vmatpush1.bf16.msra.mxu0 0
        %349 = vmatprep.subr.bf16.mxu0 0
        %350 = vmatpush1.bf16.msra.mxu0 0
        %351 = vmatprep.subr.bf16.mxu0 0
        %352 = vmatpush1.bf16.msra.mxu0 0
        %353 = vmatprep.subr.bf16.mxu0 0
        %354 = vmatpush1.bf16.msra.mxu0 0
        %355 = vmatprep.mubr.bf16.mxu0 0
        %356 = vmatmul.mubr.bf16.gmra.mrb[0].mxu0 %v321
        %v357 = vpop.f32.mrb[0].mxu0
        %v358 = vadd.f32 %v311, %v357
        %v359 = vpop.f32.mrb[0].mxu0
        %v360 = vpop.f32.mrb[0].mxu0
        %v361 = vadd.f32 %v311, %v360
        %v362 = vpop.f32.mrb[0].mxu0
        %363 = vdwg.mxu0
        %v364 = vmax.f32 %v358, 0.0
        %v365 = vmax.f32 %v361, 0.0
        %v366 = vpack.c.bf16 %v365, %v364
        %v367 = vld [vmem:[%s3] sm:$0xf]
        %v368 = vld [vmem:[%s3 + $0x4] sm:$0xf]
        %v369 = vld [vmem:[%s3 + $0x8] sm:$0xf]
        %v370 = vld [vmem:[%s3 + $0xc] sm:$0xf]
        %v371 = vld [vmem:[%s4] sm:$0x1]
        %v373 = vlaneseq
        %v374 = vshrl.u32 %v373, 7
        %v375 = vsub.s32 0, %v374
        %v376 = vrot.slane %v371, %v375
        %v382 = vunpack.c.l.b16 %v367
        %v383 = vunpack.c.l.b16 %v368
        %v384 = vunpack.c.l.b16 %v369
        %v385 = vunpack.c.l.b16 %v370
        %v386 = vpack.c.b16 %v383, %v382
        %v387 = vpack.c.b16 %v385, %v384
        %vm390 = vcmask 261120
        %v392 = vsel %vm390, %v366, 0
        %394 = vmatprep.subr.bf16.mxu0 0
        %395 = vmatpush1.bf16.msra.mxu0 %v386
        %396 = vmatprep.subr.bf16.mxu0 0
        %397 = vmatpush1.bf16.msra.mxu0 %v387
        %398 = vmatprep.subr.bf16.mxu0 0
        %399 = vmatpush1.bf16.msra.mxu0 0
        %400 = vmatprep.subr.bf16.mxu0 0
        %401 = vmatpush1.bf16.msra.mxu0 0
        %402 = vmatprep.subr.bf16.mxu0 0
        %403 = vmatpush1.bf16.msra.mxu0 0
        %404 = vmatprep.subr.bf16.mxu0 0
        %405 = vmatpush1.bf16.msra.mxu0 0
        %406 = vmatprep.subr.bf16.mxu0 0
        %407 = vmatpush1.bf16.msra.mxu0 0
        %408 = vmatprep.subr.bf16.mxu0 0
        %409 = vmatpush1.bf16.msra.mxu0 0
        %410 = vmatprep.subr.bf16.mxu0 0
        %411 = vmatpush1.bf16.msra.mxu0 0
        %412 = vmatprep.subr.bf16.mxu0 0
        %413 = vmatpush1.bf16.msra.mxu0 0
        %414 = vmatprep.subr.bf16.mxu0 0
        %415 = vmatpush1.bf16.msra.mxu0 0
        %416 = vmatprep.subr.bf16.mxu0 0
        %417 = vmatpush1.bf16.msra.mxu0 0
        %418 = vmatprep.subr.bf16.mxu0 0
        %419 = vmatpush1.bf16.msra.mxu0 0
        %420 = vmatprep.subr.bf16.mxu0 0
        %421 = vmatpush1.bf16.msra.mxu0 0
        %422 = vmatprep.subr.bf16.mxu0 0
        %423 = vmatpush1.bf16.msra.mxu0 0
        %424 = vmatprep.subr.bf16.mxu0 0
        %425 = vmatpush1.bf16.msra.mxu0 0
        %426 = vmatprep.mubr.bf16.mxu0 0
        %427 = vmatmul.mubr.bf16.gmra.mrb[0].mxu0 %v392
        %v428 = vpop.f32.mrb[0].mxu0
        %v429 = vadd.f32 %v376, %v428
        %v430 = vpop.f32.mrb[0].mxu0
        %v431 = vpop.f32.mrb[0].mxu0
        %v432 = vadd.f32 %v376, %v431
        %v433 = vpop.f32.mrb[0].mxu0
        %434 = vdwg.mxu0
        %v435 = vmax.f32 %v429, 0.0
        %v436 = vmax.f32 %v432, 0.0
        %v437 = vpack.c.bf16 %v436, %v435
        %v438 = vld [vmem:[%s5] sm:$0xf]
        %v439 = vld [vmem:[%s5 + $0x4] sm:$0xf]
        %v440 = vld [vmem:[%s5 + $0x8] sm:$0xf]
        %v441 = vld [vmem:[%s5 + $0xc] sm:$0xf]
        %v442 = vld [vmem:[%s6] sm:$0x1]
        %v444 = vlaneseq
        %v445 = vshrl.u32 %v444, 7
        %v446 = vsub.s32 0, %v445
        %v447 = vrot.slane %v442, %v446
        %v453 = vunpack.c.l.b16 %v438
        %v454 = vunpack.c.l.b16 %v439
        %v455 = vunpack.c.l.b16 %v440
        %v456 = vunpack.c.l.b16 %v441
        %v457 = vpack.c.b16 %v454, %v453
        %v458 = vpack.c.b16 %v456, %v455
        %v462 = vsel %vm390, %v437, 0
        %464 = vmatprep.subr.bf16.mxu0 0
        %465 = vmatpush1.bf16.msra.mxu0 %v457
        %466 = vmatprep.subr.bf16.mxu0 0
        %467 = vmatpush1.bf16.msra.mxu0 %v458
        %468 = vmatprep.subr.bf16.mxu0 0
        %469 = vmatpush1.bf16.msra.mxu0 0
        %470 = vmatprep.subr.bf16.mxu0 0
        %471 = vmatpush1.bf16.msra.mxu0 0
        %472 = vmatprep.subr.bf16.mxu0 0
        %473 = vmatpush1.bf16.msra.mxu0 0
        %474 = vmatprep.subr.bf16.mxu0 0
        %475 = vmatpush1.bf16.msra.mxu0 0
        %476 = vmatprep.subr.bf16.mxu0 0
        %477 = vmatpush1.bf16.msra.mxu0 0
        %478 = vmatprep.subr.bf16.mxu0 0
        %479 = vmatpush1.bf16.msra.mxu0 0
        %480 = vmatprep.subr.bf16.mxu0 0
        %481 = vmatpush1.bf16.msra.mxu0 0
        %482 = vmatprep.subr.bf16.mxu0 0
        %483 = vmatpush1.bf16.msra.mxu0 0
        %484 = vmatprep.subr.bf16.mxu0 0
        %485 = vmatpush1.bf16.msra.mxu0 0
        %486 = vmatprep.subr.bf16.mxu0 0
        %487 = vmatpush1.bf16.msra.mxu0 0
        %488 = vmatprep.subr.bf16.mxu0 0
        %489 = vmatpush1.bf16.msra.mxu0 0
        %490 = vmatprep.subr.bf16.mxu0 0
        %491 = vmatpush1.bf16.msra.mxu0 0
        %492 = vmatprep.subr.bf16.mxu0 0
        %493 = vmatpush1.bf16.msra.mxu0 0
        %494 = vmatprep.subr.bf16.mxu0 0
        %495 = vmatpush1.bf16.msra.mxu0 0
        %496 = vmatprep.mubr.bf16.mxu0 0
        %497 = vmatmul.mubr.bf16.gmra.mrb[0].mxu0 %v462
        %v498 = vpop.f32.mrb[0].mxu0
        %v499 = vadd.f32 %v447, %v498
        %v500 = vpop.f32.mrb[0].mxu0
        %v501 = vpop.f32.mrb[0].mxu0
        %v502 = vadd.f32 %v447, %v501
        %v503 = vpop.f32.mrb[0].mxu0
        %504 = vdwg.mxu0
        %v505 = vpack.c.bf16 %v502, %v499
        %v507 = vunpack.c.l.b16 %v505
        %v508 = vunpack.c.h.b16 %v505
        %v509 = vpack.c.b16 %v507, %v507
        %v510 = vpack.c.b16 %v508, %v508
        %vm513 = vcmask 60416
        %514 = vst.msk [vmem:[%s280] sm:$0xf] %vm513, %v509
        %515 = vst.msk [vmem:[%s280 + $0x4] sm:$0xf] %vm513, %v510
        %s516 = sand.u32 %s178, 1
        %s517 = sand.u32 %s178, 1
        %s518 = smul.addr %s517, 8
        %s519 = scalar_lea.vmem [#allocation2], %s518
        // Predicated region
        $region49: #{dqn_forward.1} parent=47 // pred_check
          %p520 = pneg %p188
        $region50: #{dqn_forward.1} parent=47 // pred_check_branch
          %522 = sbr.rel (%p520) target = $region52
        $region51: #{dqn_forward.1} parent=47 // pred_region
          %s523 = smul.u32 2, %s18
          %s524 = ssub.s32 5, %s523
          %p525 = scmp.lt.s32.totalorder %s524, 2
          %s526 = scalar_select %p525, %s524, 2
          %s527 = smul.u32 64, %s526
          %p528 = scmp.ne.s32.totalorder 0, %s527
          %s529 = smul.addr %s523, 4
          %s530 = scalar_lea.vmem %s7, %s529
          // Predicated region
          $region53: #{dqn_forward.1} parent=51 // pred_check
            %p531 = pneg %p528
          $region54: #{dqn_forward.1} parent=51 // pred_check_branch
            %533 = sbr.rel (%p531) target = $region56
          $region55: #{dqn_forward.1} parent=51 // pred_region
            // Predicated region
            $region57: #{dqn_forward.1} parent=55 // pred_check
              _
            $region58: #{dqn_forward.1} parent=55 // pred_check_branch
              %535 = sbr.rel target = $region60
            $region59: #{dqn_forward.1} parent=55 // pred_region
              // Predicated region
              $region79: #{dqn_forward.1} parent=59 // pred_check
                _
              $region80: #{dqn_forward.1} parent=59 // pred_check_branch
                %586 = sbr.rel (0) target = $region82
              $region81: #{dqn_forward.1} parent=59 // pred_region
                %s588 = sshrl.u32 %s526, 1
                // While loop
                $region83: #{dqn_forward.1} parent=81 // loop_pre_header
                  _
                $region84: #{dqn_forward.1} parent=81 // loop_header
                  %s590 = sphi 0, %s592
                  %p591 = scmp.ge.s32.totalorder %s590, %s588
                  %s595 = sphi 0, %s604
                  %s596 = sphi %s519, %s607
                  %s597 = sphi %s530, %s608
                $region85: #{dqn_forward.1} parent=81 // loop_header_branch
                  %594 = sbr.rel (%p591) target = $region89
                $region86: #{dqn_forward.1} parent=81 // loop_body
                  %v598 = vld [vmem:[%s596] sm:$0xf]
                  %599 = vst [vmem:[%s597] sm:$0xf] %v598
                  %v600 = vld [vmem:[%s596 + $0x4] sm:$0xf]
                  %601 = vst [vmem:[%s597 + $0x4] sm:$0xf] %v600
                  %s602 = sadd.s32 1, %s595
                  %p603 = scmp.ge.s32.totalorder %s602, %s588
                  %s604 = scalar_select %p603, 0, %s602
                  %s605 = smul.u32 %s604, 8
                  %s606 = smul.u32 %s604, 8
                  %s607 = scalar_lea.vmem %s519, %s605 [#allocation2]
                  %s608 = scalar_lea.vmem %s530, %s606
                $region87: #{dqn_forward.1} parent=81 // loop_footer
                  %s592 = sadd.s32 %s590, 1
                $region88: #{dqn_forward.1} parent=81 // loop_footer_branch
                  %589 = sbr.rel target = $region84
                $region89: #{dqn_forward.1} parent=81 // loop_exit
                  _
                %s609 = sshrl.u32 %s526, 1
                %s610 = sand.u32 %s526, 1
                %s611 = smul.u32 %s609, 2
                %s612 = smul.u32 4, %s611
                %s613 = scalar_lea.vmem %s519, %s612 [#allocation2]
                %s614 = smul.u32 4, %s611
                %s615 = scalar_lea.vmem %s530, %s614
                // While loop
                $region90: #{dqn_forward.1} parent=81 // loop_pre_header
                  _
                $region91: #{dqn_forward.1} parent=81 // loop_header
                  %s617 = sphi 0, %s619
                  %p618 = scmp.ge.s32.totalorder %s617, %s610
                  %s622 = sphi 0, %s629
                  %s623 = sphi %s613, %s632
                  %s624 = sphi %s615, %s633
                $region92: #{dqn_forward.1} parent=81 // loop_header_branch
                  %621 = sbr.rel (%p618) target = $region96
                $region93: #{dqn_forward.1} parent=81 // loop_body
                  %v625 = vld [vmem:[%s623] sm:$0xf]
                  %626 = vst [vmem:[%s624] sm:$0xf] %v625
                  %s627 = sadd.s32 1, %s622
                  %p628 = scmp.ge.s32.totalorder %s627, %s610
                  %s629 = scalar_select %p628, 0, %s627
                  %s630 = smul.u32 %s629, 4
                  %s631 = smul.u32 %s629, 4
                  %s632 = scalar_lea.vmem %s613, %s630 [#allocation2]
                  %s633 = scalar_lea.vmem %s615, %s631
                $region94: #{dqn_forward.1} parent=81 // loop_footer
                  %s619 = sadd.s32 %s617, 1
                $region95: #{dqn_forward.1} parent=81 // loop_footer_branch
                  %616 = sbr.rel target = $region91
                $region96: #{dqn_forward.1} parent=81 // loop_exit
                  _
              $region82: #{dqn_forward.1} parent=59 // pred_fallthru
                _
            $region60: #{dqn_forward.1} parent=55 // pred_fallthru
              _
            // Predicated region
            $region61: #{dqn_forward.1} parent=55 // pred_check
              _
            $region62: #{dqn_forward.1} parent=55 // pred_check_branch
              %537 = sbr.rel (0) target = $region64
            $region63: #{dqn_forward.1} parent=55 // pred_region
              %s539 = sshrl.u32 %s526, 1
              // While loop
              $region65: #{dqn_forward.1} parent=63 // loop_pre_header
                _
              $region66: #{dqn_forward.1} parent=63 // loop_header
                %s541 = sphi 0, %s543
                %p542 = scmp.ge.s32.totalorder %s541, %s539
                %s546 = sphi 0, %s555
                %s547 = sphi %s519, %s558
                %s548 = sphi %s530, %s559
              $region67: #{dqn_forward.1} parent=63 // loop_header_branch
                %545 = sbr.rel (%p542) target = $region71
              $region68: #{dqn_forward.1} parent=63 // loop_body
                %v549 = vld [vmem:[%s547] sm:$0xf]
                %550 = vst [vmem:[%s548] sm:$0xf] %v549
                %v551 = vld [vmem:[%s547 + $0x4] sm:$0xf]
                %552 = vst [vmem:[%s548 + $0x4] sm:$0xf] %v551
                %s553 = sadd.s32 1, %s546
                %p554 = scmp.ge.s32.totalorder %s553, %s539
                %s555 = scalar_select %p554, 0, %s553
                %s556 = smul.u32 %s555, 8
                %s557 = smul.u32 %s555, 8
                %s558 = scalar_lea.vmem %s519, %s556 [#allocation2]
                %s559 = scalar_lea.vmem %s530, %s557
              $region69: #{dqn_forward.1} parent=63 // loop_footer
                %s543 = sadd.s32 %s541, 1
              $region70: #{dqn_forward.1} parent=63 // loop_footer_branch
                %540 = sbr.rel target = $region66
              $region71: #{dqn_forward.1} parent=63 // loop_exit
                _
              %s560 = sshrl.u32 %s526, 1
              %s561 = sand.u32 %s526, 1
              %s562 = smul.u32 %s560, 2
              %s563 = smul.u32 4, %s562
              %s564 = scalar_lea.vmem %s519, %s563 [#allocation2]
              %s565 = smul.u32 4, %s562
              %s566 = scalar_lea.vmem %s530, %s565
              // While loop
              $region72: #{dqn_forward.1} parent=63 // loop_pre_header
                _
              $region73: #{dqn_forward.1} parent=63 // loop_header
                %s568 = sphi 0, %s570
                %p569 = scmp.ge.s32.totalorder %s568, %s561
                %s573 = sphi 0, %s580
                %s574 = sphi %s564, %s583
                %s575 = sphi %s566, %s584
              $region74: #{dqn_forward.1} parent=63 // loop_header_branch
                %572 = sbr.rel (%p569) target = $region78
              $region75: #{dqn_forward.1} parent=63 // loop_body
                %v576 = vld [vmem:[%s574] sm:$0xf]
                %577 = vst [vmem:[%s575] sm:$0xf] %v576
                %s578 = sadd.s32 1, %s573
                %p579 = scmp.ge.s32.totalorder %s578, %s561
                %s580 = scalar_select %p579, 0, %s578
                %s581 = smul.u32 %s580, 4
                %s582 = smul.u32 %s580, 4
                %s583 = scalar_lea.vmem %s564, %s581 [#allocation2]
                %s584 = scalar_lea.vmem %s566, %s582
              $region76: #{dqn_forward.1} parent=63 // loop_footer
                %s570 = sadd.s32 %s568, 1
              $region77: #{dqn_forward.1} parent=63 // loop_footer_branch
                %567 = sbr.rel target = $region73
              $region78: #{dqn_forward.1} parent=63 // loop_exit
                _
            $region64: #{dqn_forward.1} parent=55 // pred_fallthru
              _
          $region56: #{dqn_forward.1} parent=51 // pred_fallthru
            _
          %634 = vnop
        $region52: #{dqn_forward.1} parent=47 // pred_fallthru
          _
      $region48: #{dqn_forward.1} parent=5 // pred_fallthru
        _
      %p635 = scmp.le.s32.totalorder 2, %s13
      // Predicated region
      $region97: #{dqn_forward.1} parent=5 // pred_check
        %p636 = pneg %p635
      $region98: #{dqn_forward.1} parent=5 // pred_check_branch
        %638 = sbr.rel (%p636) target = $region100
      $region99: #{dqn_forward.1} parent=5 // pred_region
        %s639 = ssub.s32 %s13, 2
        // Predicated region
        $region101: #{dqn_forward.1} parent=99 // pred_check
          %p640 = pneg %p194
        $region102: #{dqn_forward.1} parent=99 // pred_check_branch
          %642 = sbr.rel (%p640) target = $region104
        $region103: #{dqn_forward.1} parent=99 // pred_region
          %s643 = sand.u32 %s179, 1
          %s644 = sand.u32 %s179, 1
          %s645 = smul.addr %s644, 8
          %s646 = scalar_lea.vmem [#allocation2], %s645
        $region104: #{dqn_forward.1} parent=99 // pred_fallthru
          _
      $region100: #{dqn_forward.1} parent=5 // pred_fallthru
        _
    $region6: #{dqn_forward.1} parent=1 // loop_footer
      %s17 = sadd.s32 1, %s13
    $region7: #{dqn_forward.1} parent=1 // loop_footer_branch
      %12 = sbr.rel target = $region3
    $region8: #{dqn_forward.1} parent=1 // loop_exit
      _

</llo_original>
